<compile_context>
chip_gen: v7x
topology: tpu7x:2x2x1
jax: 0.10.0
libtpu: 0.0.40
codegen_flags: <defaults>
</compile_context>

<pallas_src>
import functools

import jax
import jax.numpy as jnp
from jax.experimental import pallas as pl
from jax.experimental.pallas import tpu as pltpu


def _round_up(x, m):
    return (x + m - 1) // m * m


def dense_net_kernel(x_ref, w1_ref, b1_ref, w2_ref, b2_ref, out_ref, *,
                     bf16_eup):
    # x_ref:   (TB, I)   f32
    # w1_ref:  (I, HP)   bf16  (pre-transposed (K, N) layout -> feeds MXU directly)
    # b1_ref:  (1, HP)   f32
    # w2_ref:  (HP, OP)  bf16  (pre-transposed)
    # b2_ref:  (1, OP)   f32   (padded lanes baked to -1e30)
    # out_ref: (TB, OP)  f32   (lane-dense; padded cols hold ~-1e30, sliced away)
    w1 = w1_ref[...]
    x = x_ref[...].astype(w1.dtype)            # bf16 MXU operand, f32 accumulation
    h32 = jnp.dot(x, w1, preferred_element_type=jnp.float32) + b1_ref[...]
    if bf16_eup:
        h = jnp.tanh(h32.astype(jnp.bfloat16))   # bf16 EUP (v6e/v7x); MXU-ready
    else:
        h = jnp.tanh(h32).astype(jnp.bfloat16)   # v5e: f32 EUP only

    logits = jnp.dot(h, w2_ref[...],
                     preferred_element_type=jnp.float32) + b2_ref[...]

    # Numerically-stable log-softmax.  No explicit padding mask: the -1e30
    # baked into b2's padded lanes loses the max and exp() underflows to 0,
    # so padded lanes never touch the normalizer.
    m = jnp.max(logits, axis=-1, keepdims=True)
    z = logits - m
    lse = jnp.log(jnp.sum(jnp.exp(z), axis=-1, keepdims=True))
    out_ref[...] = (z - lse).astype(out_ref.dtype)


def prepare_params(w1, b1, w2, b2, *, compute_dtype=jnp.bfloat16):
    """One-time prep: transpose to (K, N) MXU layout, pad H/O to multiples of
    128 (lane-dense stores), cast MXU operands to bf16, and bake the output
    padding mask into b2 (-1e30 in padded lanes)."""
    hidden_size, input_size = w1.shape
    output_size = w2.shape[0]
    hp = _round_up(hidden_size, 128)
    op = _round_up(output_size, 128)

    w1p = jnp.zeros((input_size, hp), compute_dtype)
    w1p = w1p.at[:, :hidden_size].set(w1.T.astype(compute_dtype))
    b1p = jnp.zeros((1, hp), jnp.float32).at[:, :hidden_size].set(b1)

    w2p = jnp.zeros((hp, op), compute_dtype)
    w2p = w2p.at[:hidden_size, :output_size].set(w2.T.astype(compute_dtype))
    b2p = jnp.full((1, op), -1e30, jnp.float32).at[:, :output_size].set(b2)
    return w1p, b1p, w2p, b2p


@functools.partial(jax.jit, static_argnames=("tb", "bf16_eup"))
def _dense_net_call(x, w1p, b1p, w2p, b2p, *, tb, bf16_eup):
    batch, input_size = x.shape          # batch is already a multiple of tb
    hp = w1p.shape[1]
    op = w2p.shape[1]
    grid = (batch // tb,)

    kernel = functools.partial(dense_net_kernel, bf16_eup=bf16_eup)
    resident = lambda i: (0, 0)          # weights/biases resident across tiles

    # VMEM budget: double-buffered x/out streams + resident params + f32
    # intermediates, with 2x headroom; capped at 64 MiB so it is valid on v7x.
    w_bytes = (w1p.size + w2p.size) * 2 + (b1p.size + b2p.size) * 4
    stream_bytes = 2 * tb * (input_size + op) * 4
    interm_bytes = tb * (hp + op) * 8
    vmem_limit = int(min(64 * 1024 * 1024,
                         max(2 * (w_bytes + stream_bytes + interm_bytes),
                             8 * 1024 * 1024)))

    flops = 2 * batch * (input_size * hp + hp * op)
    bytes_accessed = (x.size * 4 + batch * op * 4 + w_bytes)

    return pl.pallas_call(
        kernel,
        out_shape=jax.ShapeDtypeStruct((batch, op), jnp.float32),
        grid_spec=pltpu.PrefetchScalarGridSpec(
            num_scalar_prefetch=0,
            grid=grid,
            in_specs=[
                pl.BlockSpec((tb, input_size), lambda i: (i, 0)),
                pl.BlockSpec((input_size, hp), resident),
                pl.BlockSpec((1, hp), resident),
                pl.BlockSpec((hp, op), resident),
                pl.BlockSpec((1, op), resident),
            ],
            out_specs=pl.BlockSpec((tb, op), lambda i: (i, 0)),
        ),
        compiler_params=pltpu.CompilerParams(
            dimension_semantics=("parallel",),   # shard tiles over v7x's 2 TCs
            vmem_limit_bytes=vmem_limit,
        ),
        cost_estimate=pl.CostEstimate(
            flops=flops,
            transcendentals=batch * (hp + op),
            bytes_accessed=bytes_accessed),
    )(x, w1p, b1p, w2p, b2p)


def dense_net_forward(x, w1p, b1p, w2p, b2p, *, output_size, tb=None):
    """x: (B, input_size) f32 -- each row is one module forward pass."""
    batch = x.shape[0]

    kind = jax.devices()[0].device_kind.lower()
    two_cores = "v7" in kind                     # v7x: 2 TensorCores per chip
    bf16_eup = ("v6" in kind) or ("v7" in kind)  # bf16 tanh path on v6e/v7x

    if tb is None:
        tiles = 2 if two_cores else 1            # single fat tile on v5e/v6e
        tb = _round_up(pl.cdiv(batch, tiles), 8)
        tb = min(tb, 1024)                       # keep streamed tiles VMEM-sane
    tb = max(8, min(_round_up(tb, 8), _round_up(batch, 8)))

    # Pad batch to a multiple of tb so no grid step sees stale-VMEM rows.
    pad_batch = _round_up(batch, tb)
    if pad_batch != batch:
        x = jnp.pad(x, ((0, pad_batch - batch), (0, 0)))

    out_padded = _dense_net_call(x, w1p, b1p, w2p, b2p, tb=tb,
                                 bf16_eup=bf16_eup)
    # Drop batch padding and lane padding (separate copy; see TODO at top).
    return out_padded[:batch, :output_size]


def init_linear_params(key, in_features, out_features):
    """Mimic torch.nn.Linear default init: U(-1/sqrt(in), 1/sqrt(in))."""
    kw, kb = jax.random.split(key)
    bound = 1.0 / jnp.sqrt(jnp.float32(in_features))
    w = jax.random.uniform(kw, (out_features, in_features), jnp.float32,
                           minval=-bound, maxval=bound)
    b = jax.random.uniform(kb, (out_features,), jnp.float32,
                           minval=-bound, maxval=bound)
    return w, b


if __name__ == "__main__":
    input_size, hidden_size, output_size = 32, 64, 16
    batch = 256

    key = jax.random.PRNGKey(0)
    k_x, k_l1, k_l2 = jax.random.split(key, 3)

    x = jax.random.normal(k_x, (batch, input_size), jnp.float32)
    w1, b1 = init_linear_params(k_l1, input_size, hidden_size)
    w2, b2 = init_linear_params(k_l2, hidden_size, output_size)

    params = prepare_params(w1, b1, w2, b2, compute_dtype=jnp.bfloat16)
    out = dense_net_forward(x, *params, output_size=output_size)
    jax.block_until_ready(out)

    # Pure-JAX reference using the same bf16 MXU operands / f32 accumulation
    # (and the same tanh dtype the kernel picked for this chip).  Each row ==
    # one forward() of the PyTorch module on a 1-D input, where
    # LogSoftmax(dim=0) on the 1-D output == log_softmax over the last axis.
    kind = jax.devices()[0].device_kind.lower()
    bf16_eup = ("v6" in kind) or ("v7" in kind)
    w1b = w1.astype(jnp.bfloat16).astype(jnp.float32)
    w2b = w2.astype(jnp.bfloat16).astype(jnp.float32)
    xb = x.astype(jnp.bfloat16).astype(jnp.float32)
    h_pre = xb @ w1b.T + b1
    if bf16_eup:
        h_ref = jnp.tanh(h_pre.astype(jnp.bfloat16)).astype(jnp.float32)
    else:
        h_ref = jnp.tanh(h_pre)
    hb = h_ref.astype(jnp.bfloat16).astype(jnp.float32)
    logits_ref = hb @ w2b.T + b2
    ref = jax.nn.log_softmax(logits_ref, axis=-1)

    assert out.shape == (batch, output_size)
    assert bool(jnp.all(jnp.isfinite(out)))
    assert jnp.allclose(out, ref, atol=2e-2, rtol=2e-2), float(
        jnp.max(jnp.abs(out - ref)))

    print("KERNEL_OK")
</pallas_src>

<mosaic_0001>
module attributes {stable_mosaic.version = 11 : i64} {
  func.func @dense_net_kernel(%arg0: i32, %arg1: memref<256x32xf32, #tpu.memory_space<vmem>>, %arg2: memref<32x128xbf16, #tpu.memory_space<vmem>>, %arg3: memref<1x128xf32, #tpu.memory_space<vmem>>, %arg4: memref<128x128xbf16, #tpu.memory_space<vmem>>, %arg5: memref<1x128xf32, #tpu.memory_space<vmem>>, %arg6: memref<256x128xf32, #tpu.memory_space<vmem>>) attributes {dimension_semantics = [#tpu.dimension_semantics<parallel>], iteration_bounds = array<i64: 1>, scalar_prefetch = 0 : i64, scratch_operands = 0 : i64, tpu.core_type = #tpu.core_type<tc>, window_params = [{transform_indices = @transform_0, window_bounds = array<i64: 256, 32>}, {pipeline_mode = #tpu.pipeline_mode<synchronous>, transform_indices = @transform_1, window_bounds = array<i64: 32, 128>}, {pipeline_mode = #tpu.pipeline_mode<synchronous>, transform_indices = @transform_2, window_bounds = array<i64: 1, 128>}, {pipeline_mode = #tpu.pipeline_mode<synchronous>, transform_indices = @transform_3, window_bounds = array<i64: 128, 128>}, {pipeline_mode = #tpu.pipeline_mode<synchronous>, transform_indices = @transform_4, window_bounds = array<i64: 1, 128>}, {transform_indices = @transform_5, window_bounds = array<i64: 256, 128>}]} {
    %c0 = arith.constant 0 : index
    %c0_0 = arith.constant 0 : index
    %0 = vector.load %arg2[%c0, %c0_0] : memref<32x128xbf16, #tpu.memory_space<vmem>>, vector<32x128xbf16>
    %c0_1 = arith.constant 0 : index
    %c0_2 = arith.constant 0 : index
    %1 = vector.load %arg1[%c0_1, %c0_2] : memref<256x32xf32, #tpu.memory_space<vmem>>, vector<256x32xf32>
    %2 = arith.truncf %1 : vector<256x32xf32> to vector<256x32xbf16>
    %cst = arith.constant dense<0.000000e+00> : vector<256x128xf32>
    %3 = tpu.matmul %2, %0, %cst {dimension_numbers = #tpu.dot_dimension_numbers<[1], [0], [0], [1], [0, 0, 1, 1], [], []>} : vector<256x32xbf16>, vector<32x128xbf16>, vector<256x128xf32> -> vector<256x128xf32>
    %c0_3 = arith.constant 0 : index
    %c0_4 = arith.constant 0 : index
    %4 = vector.load %arg3[%c0_3, %c0_4] : memref<1x128xf32, #tpu.memory_space<vmem>>, vector<1x128xf32>
    %5 = vector.broadcast %4 : vector<1x128xf32> to vector<256x128xf32>
    %6 = arith.addf %3, %5 : vector<256x128xf32>
    %7 = math.tanh %6 : vector<256x128xf32>
    %8 = arith.truncf %7 : vector<256x128xf32> to vector<256x128xbf16>
    %c0_5 = arith.constant 0 : index
    %c0_6 = arith.constant 0 : index
    %9 = vector.load %arg4[%c0_5, %c0_6] : memref<128x128xbf16, #tpu.memory_space<vmem>>, vector<128x128xbf16>
    %cst_7 = arith.constant dense<0.000000e+00> : vector<256x128xf32>
    %10 = tpu.matmul %8, %9, %cst_7 {dimension_numbers = #tpu.dot_dimension_numbers<[1], [0], [0], [1], [0, 0, 1, 1], [], []>} : vector<256x128xbf16>, vector<128x128xbf16>, vector<256x128xf32> -> vector<256x128xf32>
    %c0_8 = arith.constant 0 : index
    %c0_9 = arith.constant 0 : index
    %11 = vector.load %arg5[%c0_8, %c0_9] : memref<1x128xf32, #tpu.memory_space<vmem>>, vector<1x128xf32>
    %12 = vector.broadcast %11 : vector<1x128xf32> to vector<256x128xf32>
    %13 = arith.addf %10, %12 : vector<256x128xf32>
    %cst_10 = arith.constant dense<0xFF800000> : vector<256xf32>
    %14 = vector.multi_reduction <maximumf>, %13, %cst_10 [1] : vector<256x128xf32> to vector<256xf32>
    %15 = vector.shape_cast %14 : vector<256xf32> to vector<256x1xf32>
    %16 = vector.broadcast %15 : vector<256x1xf32> to vector<256x128xf32>
    %17 = arith.subf %13, %16 : vector<256x128xf32>
    %18 = math.exp %17 : vector<256x128xf32>
    %cst_11 = arith.constant dense<0.000000e+00> : vector<256xf32>
    %19 = vector.multi_reduction <add>, %18, %cst_11 [1] : vector<256x128xf32> to vector<256xf32>
    %20 = vector.shape_cast %19 : vector<256xf32> to vector<256x1xf32>
    %21 = math.log %20 : vector<256x1xf32>
    %22 = vector.broadcast %21 : vector<256x1xf32> to vector<256x128xf32>
    %23 = arith.subf %17, %22 : vector<256x128xf32>
    %c0_12 = arith.constant 0 : index
    %c0_13 = arith.constant 0 : index
    %24 = vector.load %arg6[%c0_12, %c0_13] : memref<256x128xf32, #tpu.memory_space<vmem>>, vector<256x128xf32>
    tpu.vector_store %arg6[%c0_12, %c0_13], %23 {strides = array<i32>} : memref<256x128xf32, #tpu.memory_space<vmem>>, vector<256x128xf32>,
    return
  }
  func.func @transform_0(%arg0: i32) -> (i32, i32) {
    %c0_i32 = arith.constant 0 : i32
    %c0_i32_0 = arith.constant 0 : i32
    return %arg0, %c0_i32 : i32, i32
  }
  func.func @transform_1(%arg0: i32) -> (i32, i32) {
    %c0_i32 = arith.constant 0 : i32
    %c0_i32_0 = arith.constant 0 : i32
    %c0_i32_1 = arith.constant 0 : i32
    return %c0_i32, %c0_i32_0 : i32, i32
  }
  func.func @transform_2(%arg0: i32) -> (i32, i32) {
    %c0_i32 = arith.constant 0 : i32
    %c0_i32_0 = arith.constant 0 : i32
    %c0_i32_1 = arith.constant 0 : i32
    return %c0_i32, %c0_i32_0 : i32, i32
  }
  func.func @transform_3(%arg0: i32) -> (i32, i32) {
    %c0_i32 = arith.constant 0 : i32
    %c0_i32_0 = arith.constant 0 : i32
    %c0_i32_1 = arith.constant 0 : i32
    return %c0_i32, %c0_i32_0 : i32, i32
  }
  func.func @transform_4(%arg0: i32) -> (i32, i32) {
    %c0_i32 = arith.constant 0 : i32
    %c0_i32_0 = arith.constant 0 : i32
    %c0_i32_1 = arith.constant 0 : i32
    return %c0_i32, %c0_i32_0 : i32, i32
  }
  func.func @transform_5(%arg0: i32) -> (i32, i32) {
    %c0_i32 = arith.constant 0 : i32
    %c0_i32_0 = arith.constant 0 : i32
    return %arg0, %c0_i32 : i32, i32
  }
}

</mosaic_0001>

<llo_original>
// kernel: _dense_net_call.1
$region0: #{_dense_net_call.1}
  #allocation0 [shape = 'u32[]', space=smem, size = 0x4, offset = 0x4, fixed_abs, tag = 'smem constant byte address 0x4 - core index']
  #allocation1 [shape = 'u32[144,128]{1,0:T(1,128)}', space=vmem, size = 0x12000, scoped, tag = 'internal scratch']
  %s0 = inlined_call_operand.vmem [shape: f32[256,32], index: 0, kind: input, shape index: {}]
  %s1 = inlined_call_operand.vmem [shape: bf16[32,128], index: 1, kind: input, shape index: {}]
  %s2 = inlined_call_operand.vmem [shape: f32[1,128], index: 2, kind: input, shape index: {}]
  %s3 = inlined_call_operand.vmem [shape: bf16[128,128], index: 3, kind: input, shape index: {}]
  %s4 = inlined_call_operand.vmem [shape: f32[1,128], index: 4, kind: input, shape index: {}]
  %s5 = inlined_call_operand.hbm [shape: f32[256,128], index: 5, kind: output, shape index: {}]
  %s6 = sld [smem:[#allocation0]]
  $region30: #{_dense_net_call.1} parent=0
    _
  %s8 = ssub.s32 1, %s6
  %s9 = scalar_select 0, %s8, %s6
  $region1: #{_dense_net_call.1} parent=0
    #allocation2 [shape = 'u8[131072]{0}', space=vmem, size = 0x20000, scoped, tag = 'output window, operand 0, single buffered']
    #allocation3 [shape = 's32[1]{0}', space=sflag, size = 0x4, scoped, tag = 'scoped memory for _dense_net_call.1']
    %10 = vsyncpa [#allocation3], 0
    // Predicated region
    $region2: #{_dense_net_call.1} parent=1 // pred_check
      _
    $region3: #{_dense_net_call.1} parent=1 // pred_check_branch
      %12 = sbr.rel (0) target = $region5
    $region4: #{_dense_net_call.1} parent=1 // pred_region
      _
    $region5: #{_dense_net_call.1} parent=1 // pred_fallthru
      _
    // Predicated region
    $region6: #{_dense_net_call.1} parent=1 // pred_check
      _
    $region7: #{_dense_net_call.1} parent=1 // pred_check_branch
      %14 = sbr.rel (0) target = $region9
    $region8: #{_dense_net_call.1} parent=1 // pred_region
      _
    $region9: #{_dense_net_call.1} parent=1 // pred_fallthru
      _
    // Predicated region
    $region10: #{_dense_net_call.1} parent=1 // pred_check
      _
    $region11: #{_dense_net_call.1} parent=1 // pred_check_branch
      %16 = sbr.rel (0) target = $region13
    $region12: #{_dense_net_call.1} parent=1 // pred_region
      _
    $region13: #{_dense_net_call.1} parent=1 // pred_fallthru
      _
    // Predicated region
    $region14: #{_dense_net_call.1} parent=1 // pred_check
      _
    $region15: #{_dense_net_call.1} parent=1 // pred_check_branch
      %18 = sbr.rel (0) target = $region17
    $region16: #{_dense_net_call.1} parent=1 // pred_region
      _
    $region17: #{_dense_net_call.1} parent=1 // pred_fallthru
      _
    // Predicated region
    $region18: #{_dense_net_call.1} parent=1 // pred_check
      _
    $region19: #{_dense_net_call.1} parent=1 // pred_check_branch
      %20 = sbr.rel (0) target = $region21
    $region20: #{_dense_net_call.1} parent=1 // pred_region
      _
    $region21: #{_dense_net_call.1} parent=1 // pred_fallthru
      _
    %v22 = vld [vmem:[%s1] sm:$0xf]
    %v23 = vld [vmem:[%s1 + $0x4] sm:$0xf]
    %v24 = vld [vmem:[%s1 + $0x8] sm:$0xf]
    %v25 = vld [vmem:[%s1 + $0xc] sm:$0xf]
    %v26 = vld [vmem:[%s0] sm:$0xff]
    %v27 = vld [vmem:[%s0 + $0x8] sm:$0xff]
    %v28 = vld [vmem:[%s0 + $0x10] sm:$0xff]
    %v29 = vld [vmem:[%s0 + $0x18] sm:$0xff]
    %v30 = vld [vmem:[%s0 + $0x20] sm:$0xff]
    %v31 = vld [vmem:[%s0 + $0x28] sm:$0xff]
    %v32 = vld [vmem:[%s0 + $0x30] sm:$0xff]
    %v33 = vld [vmem:[%s0 + $0x38] sm:$0xff]
    %v34 = vld [vmem:[%s0 + $0x40] sm:$0xff]
    %v35 = vld [vmem:[%s0 + $0x48] sm:$0xff]
    %v36 = vld [vmem:[%s0 + $0x50] sm:$0xff]
    %v37 = vld [vmem:[%s0 + $0x58] sm:$0xff]
    %v38 = vld [vmem:[%s0 + $0x60] sm:$0xff]
    %v39 = vld [vmem:[%s0 + $0x68] sm:$0xff]
    %v40 = vld [vmem:[%s0 + $0x70] sm:$0xff]
    %v41 = vld [vmem:[%s0 + $0x78] sm:$0xff]
    %v42 = vld [vmem:[%s0 + $0x80] sm:$0xff]
    %v43 = vld [vmem:[%s0 + $0x88] sm:$0xff]
    %v44 = vld [vmem:[%s0 + $0x90] sm:$0xff]
    %v45 = vld [vmem:[%s0 + $0x98] sm:$0xff]
    %v46 = vld [vmem:[%s0 + $0xa0] sm:$0xff]
    %v47 = vld [vmem:[%s0 + $0xa8] sm:$0xff]
    %v48 = vld [vmem:[%s0 + $0xb0] sm:$0xff]
    %v49 = vld [vmem:[%s0 + $0xb8] sm:$0xff]
    %v50 = vld [vmem:[%s0 + $0xc0] sm:$0xff]
    %v51 = vld [vmem:[%s0 + $0xc8] sm:$0xff]
    %v52 = vld [vmem:[%s0 + $0xd0] sm:$0xff]
    %v53 = vld [vmem:[%s0 + $0xd8] sm:$0xff]
    %v54 = vld [vmem:[%s0 + $0xe0] sm:$0xff]
    %v55 = vld [vmem:[%s0 + $0xe8] sm:$0xff]
    %v56 = vld [vmem:[%s0 + $0xf0] sm:$0xff]
    %v57 = vld [vmem:[%s0 + $0xf8] sm:$0xff]
    %v58 = vpack.c.bf16 %v27, %v26
    %v59 = vpack.c.bf16 %v29, %v28
    %v60 = vpack.c.bf16 %v31, %v30
    %v61 = vpack.c.bf16 %v33, %v32
    %v62 = vpack.c.bf16 %v35, %v34
    %v63 = vpack.c.bf16 %v37, %v36
    %v64 = vpack.c.bf16 %v39, %v38
    %v65 = vpack.c.bf16 %v41, %v40
    %v66 = vpack.c.bf16 %v43, %v42
    %v67 = vpack.c.bf16 %v45, %v44
    %v68 = vpack.c.bf16 %v47, %v46
    %v69 = vpack.c.bf16 %v49, %v48
    %v70 = vpack.c.bf16 %v51, %v50
    %v71 = vpack.c.bf16 %v53, %v52
    %v72 = vpack.c.bf16 %v55, %v54
    %v73 = vpack.c.bf16 %v57, %v56
    %v74 = vld [vmem:[%s2] sm:$0x1]
    %v76 = vlaneseq
    %v77 = vshrl.u32 %v76, 7
    %v78 = vsub.s32 0, %v77
    %v79 = vrot.slane %v74, %v78
    %v85 = vunpack.c.l.b16 %v22
    %v86 = vunpack.c.l.b16 %v23
    %v87 = vunpack.c.l.b16 %v24
    %v88 = vunpack.c.l.b16 %v25
    %v89 = vpack.c.b16 %v86, %v85
    %v90 = vpack.c.b16 %v88, %v87
    %vm93 = vcmask 261120
    %v95 = vsel %vm93, %v58, 0
    %v98 = vsel %vm93, %v59, 0
    %v101 = vsel %vm93, %v60, 0
    %v104 = vsel %vm93, %v61, 0
    %v107 = vsel %vm93, %v62, 0
    %v110 = vsel %vm93, %v63, 0
    %v113 = vsel %vm93, %v64, 0
    %v116 = vsel %vm93, %v65, 0
    %v119 = vsel %vm93, %v66, 0
    %v122 = vsel %vm93, %v67, 0
    %v125 = vsel %vm93, %v68, 0
    %v128 = vsel %vm93, %v69, 0
    %v131 = vsel %vm93, %v70, 0
    %v134 = vsel %vm93, %v71, 0
    %v137 = vsel %vm93, %v72, 0
    %v140 = vsel %vm93, %v73, 0
    %142 = vmatprep.subr.bf16.mxu0 0
    %143 = vmatpush1.bf16.msra.mxu0 %v89
    %144 = vmatprep.subr.bf16.mxu0 0
    %145 = vmatpush1.bf16.msra.mxu0 %v90
    %146 = vmatprep.subr.bf16.mxu0 0
    %147 = vmatpush1.bf16.msra.mxu0 0
    %148 = vmatprep.subr.bf16.mxu0 0
    %149 = vmatpush1.bf16.msra.mxu0 0
    %150 = vmatprep.subr.bf16.mxu0 0
    %151 = vmatpush1.bf16.msra.mxu0 0
    %152 = vmatprep.subr.bf16.mxu0 0
    %153 = vmatpush1.bf16.msra.mxu0 0
    %154 = vmatprep.subr.bf16.mxu0 0
    %155 = vmatpush1.bf16.msra.mxu0 0
    %156 = vmatprep.subr.bf16.mxu0 0
    %157 = vmatpush1.bf16.msra.mxu0 0
    %158 = vmatprep.subr.bf16.mxu0 0
    %159 = vmatpush1.bf16.msra.mxu0 0
    %160 = vmatprep.subr.bf16.mxu0 0
    %161 = vmatpush1.bf16.msra.mxu0 0
    %162 = vmatprep.subr.bf16.mxu0 0
    %163 = vmatpush1.bf16.msra.mxu0 0
    %164 = vmatprep.subr.bf16.mxu0 0
    %165 = vmatpush1.bf16.msra.mxu0 0
    %166 = vmatprep.subr.bf16.mxu0 0
    %167 = vmatpush1.bf16.msra.mxu0 0
    %168 = vmatprep.subr.bf16.mxu0 0
    %169 = vmatpush1.bf16.msra.mxu0 0
    %170 = vmatprep.subr.bf16.mxu0 0
    %171 = vmatpush1.bf16.msra.mxu0 0
    %172 = vmatprep.subr.bf16.mxu0 0
    %173 = vmatpush1.bf16.msra.mxu0 0
    %174 = vmatprep.mubr.bf16.mxu0 0
    %175 = vmatmul.mubr.bf16.gmra.mrb[0].mxu0 %v95
    %v176 = vpop.f32.mrb[0].mxu0
    %v177 = vadd.f32 %v79, %v176
    %v178 = vpop.f32.mrb[0].mxu0
    %v179 = vpop.f32.mrb[0].mxu0
    %v180 = vadd.f32 %v79, %v179
    %v181 = vpop.f32.mrb[0].mxu0
    %182 = vmatprep.mubr.bf16.mxu0 0
    %183 = vmatmul.mubr.bf16.gmra.mrb[0].mxu0 %v98
    %v184 = vpop.f32.mrb[0].mxu0
    %v185 = vadd.f32 %v79, %v184
    %v186 = vpop.f32.mrb[0].mxu0
    %v187 = vpop.f32.mrb[0].mxu0
    %v188 = vadd.f32 %v79, %v187
    %v189 = vpop.f32.mrb[0].mxu0
    %190 = vmatprep.mubr.bf16.mxu0 0
    %191 = vmatmul.mubr.bf16.gmra.mrb[0].mxu0 %v101
    %v192 = vpop.f32.mrb[0].mxu0
    %v193 = vadd.f32 %v79, %v192
    %v194 = vpop.f32.mrb[0].mxu0
    %v195 = vpop.f32.mrb[0].mxu0
    %v196 = vadd.f32 %v79, %v195
    %v197 = vpop.f32.mrb[0].mxu0
    %198 = vmatprep.mubr.bf16.mxu0 0
    %199 = vmatmul.mubr.bf16.gmra.mrb[0].mxu0 %v104
    %v200 = vpop.f32.mrb[0].mxu0
    %v201 = vadd.f32 %v79, %v200
    %v202 = vpop.f32.mrb[0].mxu0
    %v203 = vpop.f32.mrb[0].mxu0
    %v204 = vadd.f32 %v79, %v203
    %v205 = vpop.f32.mrb[0].mxu0
    %206 = vmatprep.mubr.bf16.mxu0 0
    %207 = vmatmul.mubr.bf16.gmra.mrb[0].mxu0 %v107
    %v208 = vpop.f32.mrb[0].mxu0
    %v209 = vadd.f32 %v79, %v208
    %v210 = vpop.f32.mrb[0].mxu0
    %v211 = vpop.f32.mrb[0].mxu0
    %v212 = vadd.f32 %v79, %v211
    %v213 = vpop.f32.mrb[0].mxu0
    %214 = vmatprep.mubr.bf16.mxu0 0
    %215 = vmatmul.mubr.bf16.gmra.mrb[0].mxu0 %v110
    %v216 = vpop.f32.mrb[0].mxu0
    %v217 = vadd.f32 %v79, %v216
    %v218 = vpop.f32.mrb[0].mxu0
    %v219 = vpop.f32.mrb[0].mxu0
    %v220 = vadd.f32 %v79, %v219
    %v221 = vpop.f32.mrb[0].mxu0
    %222 = vmatprep.mubr.bf16.mxu0 0
    %223 = vmatmul.mubr.bf16.gmra.mrb[0].mxu0 %v113
    %v224 = vpop.f32.mrb[0].mxu0
    %v225 = vadd.f32 %v79, %v224
    %v226 = vpop.f32.mrb[0].mxu0
    %v227 = vpop.f32.mrb[0].mxu0
    %v228 = vadd.f32 %v79, %v227
    %v229 = vpop.f32.mrb[0].mxu0
    %230 = vmatprep.mubr.bf16.mxu0 0
    %231 = vmatmul.mubr.bf16.gmra.mrb[0].mxu0 %v116
    %v232 = vpop.f32.mrb[0].mxu0
    %v233 = vadd.f32 %v79, %v232
    %v234 = vpop.f32.mrb[0].mxu0
    %v235 = vpop.f32.mrb[0].mxu0
    %v236 = vadd.f32 %v79, %v235
    %v237 = vpop.f32.mrb[0].mxu0
    %238 = vmatprep.mubr.bf16.mxu0 0
    %239 = vmatmul.mubr.bf16.gmra.mrb[0].mxu0 %v119
    %v240 = vpop.f32.mrb[0].mxu0
    %v241 = vadd.f32 %v79, %v240
    %v242 = vpop.f32.mrb[0].mxu0
    %v243 = vpop.f32.mrb[0].mxu0
    %v244 = vadd.f32 %v79, %v243
    %v245 = vpop.f32.mrb[0].mxu0
    %246 = vmatprep.mubr.bf16.mxu0 0
    %247 = vmatmul.mubr.bf16.gmra.mrb[0].mxu0 %v122
    %v248 = vpop.f32.mrb[0].mxu0
    %v249 = vadd.f32 %v79, %v248
    %v250 = vpop.f32.mrb[0].mxu0
    %v251 = vpop.f32.mrb[0].mxu0
    %v252 = vadd.f32 %v79, %v251
    %v253 = vpop.f32.mrb[0].mxu0
    %254 = vmatprep.mubr.bf16.mxu0 0
    %255 = vmatmul.mubr.bf16.gmra.mrb[0].mxu0 %v125
    %v256 = vpop.f32.mrb[0].mxu0
    %v257 = vadd.f32 %v79, %v256
    %v258 = vpop.f32.mrb[0].mxu0
    %v259 = vpop.f32.mrb[0].mxu0
    %v260 = vadd.f32 %v79, %v259
    %v261 = vpop.f32.mrb[0].mxu0
    %262 = vmatprep.mubr.bf16.mxu0 0
    %263 = vmatmul.mubr.bf16.gmra.mrb[0].mxu0 %v128
    %v264 = vpop.f32.mrb[0].mxu0
    %v265 = vadd.f32 %v79, %v264
    %v266 = vpop.f32.mrb[0].mxu0
    %v267 = vpop.f32.mrb[0].mxu0
    %v268 = vadd.f32 %v79, %v267
    %v269 = vpop.f32.mrb[0].mxu0
    %270 = vmatprep.mubr.bf16.mxu0 0
    %271 = vmatmul.mubr.bf16.gmra.mrb[0].mxu0 %v131
    %v272 = vpop.f32.mrb[0].mxu0
    %v273 = vadd.f32 %v79, %v272
    %v274 = vpop.f32.mrb[0].mxu0
    %v275 = vpop.f32.mrb[0].mxu0
    %v276 = vadd.f32 %v79, %v275
    %v277 = vpop.f32.mrb[0].mxu0
    %278 = vmatprep.mubr.bf16.mxu0 0
    %279 = vmatmul.mubr.bf16.gmra.mrb[0].mxu0 %v134
    %v280 = vpop.f32.mrb[0].mxu0
    %v281 = vadd.f32 %v79, %v280
    %v282 = vpop.f32.mrb[0].mxu0
    %v283 = vpop.f32.mrb[0].mxu0
    %v284 = vadd.f32 %v79, %v283
    %v285 = vpop.f32.mrb[0].mxu0
    %286 = vmatprep.mubr.bf16.mxu0 0
    %287 = vmatmul.mubr.bf16.gmra.mrb[0].mxu0 %v137
    %v288 = vpop.f32.mrb[0].mxu0
    %v289 = vadd.f32 %v79, %v288
    %v290 = vpop.f32.mrb[0].mxu0
    %v291 = vpop.f32.mrb[0].mxu0
    %v292 = vadd.f32 %v79, %v291
    %v293 = vpop.f32.mrb[0].mxu0
    %294 = vmatprep.mubr.bf16.mxu0 0
    %295 = vmatmul.mubr.bf16.gmra.mrb[0].mxu0 %v140
    %v296 = vpop.f32.mrb[0].mxu0
    %v297 = vadd.f32 %v79, %v296
    %v298 = vpop.f32.mrb[0].mxu0
    %v299 = vpop.f32.mrb[0].mxu0
    %v300 = vadd.f32 %v79, %v299
    %v301 = vpop.f32.mrb[0].mxu0
    %302 = vdwg.mxu0
    %v303 = vtanh.pop %v177
    %v304 = vtanh.pop %v180
    %v305 = vtanh.pop %v185
    %v306 = vtanh.pop %v188
    %v307 = vtanh.pop %v193
    %v308 = vtanh.pop %v196
    %v309 = vtanh.pop %v201
    %v310 = vtanh.pop %v204
    %v311 = vtanh.pop %v209
    %v312 = vtanh.pop %v212
    %v313 = vtanh.pop %v217
    %v314 = vtanh.pop %v220
    %v315 = vtanh.pop %v225
    %v316 = vtanh.pop %v228
    %v317 = vtanh.pop %v233
    %v318 = vtanh.pop %v236
    %v319 = vtanh.pop %v241
    %v320 = vtanh.pop %v244
    %v321 = vtanh.pop %v249
    %v322 = vtanh.pop %v252
    %v323 = vtanh.pop %v257
    %v324 = vtanh.pop %v260
    %v325 = vtanh.pop %v265
    %v326 = vtanh.pop %v268
    %v327 = vtanh.pop %v273
    %v328 = vtanh.pop %v276
    %v329 = vtanh.pop %v281
    %v330 = vtanh.pop %v284
    %v331 = vtanh.pop %v289
    %v332 = vtanh.pop %v292
    %v333 = vtanh.pop %v297
    %v334 = vtanh.pop %v300
    %v335 = vpack.c.bf16 %v304, %v303
    %v336 = vpack.c.bf16 %v306, %v305
    %v337 = vpack.c.bf16 %v308, %v307
    %v338 = vpack.c.bf16 %v310, %v309
    %v339 = vpack.c.bf16 %v312, %v311
    %v340 = vpack.c.bf16 %v314, %v313
    %v341 = vpack.c.bf16 %v316, %v315
    %v342 = vpack.c.bf16 %v318, %v317
    %v343 = vpack.c.bf16 %v320, %v319
    %v344 = vpack.c.bf16 %v322, %v321
    %v345 = vpack.c.bf16 %v324, %v323
    %v346 = vpack.c.bf16 %v326, %v325
    %v347 = vpack.c.bf16 %v328, %v327
    %v348 = vpack.c.bf16 %v330, %v329
    %v349 = vpack.c.bf16 %v332, %v331
    %v350 = vpack.c.bf16 %v334, %v333
    %v351 = vld [vmem:[%s3] sm:$0xf]
    %v352 = vld [vmem:[%s3 + $0x4] sm:$0xf]
    %v353 = vld [vmem:[%s3 + $0x8] sm:$0xf]
    %v354 = vld [vmem:[%s3 + $0xc] sm:$0xf]
    %v355 = vld [vmem:[%s3 + $0x10] sm:$0xf]
    %v356 = vld [vmem:[%s3 + $0x14] sm:$0xf]
    %v357 = vld [vmem:[%s3 + $0x18] sm:$0xf]
    %v358 = vld [vmem:[%s3 + $0x1c] sm:$0xf]
    %v359 = vld [vmem:[%s3 + $0x20] sm:$0xf]
    %v360 = vld [vmem:[%s3 + $0x24] sm:$0xf]
    %v361 = vld [vmem:[%s3 + $0x28] sm:$0xf]
    %v362 = vld [vmem:[%s3 + $0x2c] sm:$0xf]
    %v363 = vld [vmem:[%s3 + $0x30] sm:$0xf]
    %v364 = vld [vmem:[%s3 + $0x34] sm:$0xf]
    %v365 = vld [vmem:[%s3 + $0x38] sm:$0xf]
    %v366 = vld [vmem:[%s3 + $0x3c] sm:$0xf]
    %v367 = vld [vmem:[%s4] sm:$0x1]
    %v369 = vlaneseq
    %v370 = vshrl.u32 %v369, 7
    %v371 = vsub.s32 0, %v370
    %v372 = vrot.slane %v367, %v371
    %v390 = vunpack.c.l.b16 %v351
    %v391 = vunpack.c.l.b16 %v352
    %v392 = vunpack.c.l.b16 %v353
    %v393 = vunpack.c.l.b16 %v354
    %v394 = vunpack.c.l.b16 %v355
    %v395 = vunpack.c.l.b16 %v356
    %v396 = vunpack.c.l.b16 %v357
    %v397 = vunpack.c.l.b16 %v358
    %v398 = vunpack.c.l.b16 %v359
    %v399 = vunpack.c.l.b16 %v360
    %v400 = vunpack.c.l.b16 %v361
    %v401 = vunpack.c.l.b16 %v362
    %v402 = vunpack.c.l.b16 %v363
    %v403 = vunpack.c.l.b16 %v364
    %v404 = vunpack.c.l.b16 %v365
    %v405 = vunpack.c.l.b16 %v366
    %v406 = vpack.c.b16 %v391, %v390
    %v407 = vpack.c.b16 %v393, %v392
    %v408 = vpack.c.b16 %v395, %v394
    %v409 = vpack.c.b16 %v397, %v396
    %v410 = vpack.c.b16 %v399, %v398
    %v411 = vpack.c.b16 %v401, %v400
    %v412 = vpack.c.b16 %v403, %v402
    %v413 = vpack.c.b16 %v405, %v404
    %422 = vmatprep.subr.bf16.mxu0 0
    %423 = vmatpush1.bf16.msra.mxu0 %v406
    %424 = vmatprep.subr.bf16.mxu0 0
    %425 = vmatpush1.bf16.msra.mxu0 %v407
    %426 = vmatprep.subr.bf16.mxu0 0
    %427 = vmatpush1.bf16.msra.mxu0 %v408
    %428 = vmatprep.subr.bf16.mxu0 0
    %429 = vmatpush1.bf16.msra.mxu0 %v409
    %430 = vmatprep.subr.bf16.mxu0 0
    %431 = vmatpush1.bf16.msra.mxu0 %v410
    %432 = vmatprep.subr.bf16.mxu0 0
    %433 = vmatpush1.bf16.msra.mxu0 %v411
    %434 = vmatprep.subr.bf16.mxu0 0
    %435 = vmatpush1.bf16.msra.mxu0 %v412
    %436 = vmatprep.subr.bf16.mxu0 0
    %437 = vmatpush1.bf16.msra.mxu0 %v413
    %438 = vmatprep.subr.bf16.mxu0 0
    %439 = vmatpush1.bf16.msra.mxu0 0
    %440 = vmatprep.subr.bf16.mxu0 0
    %441 = vmatpush1.bf16.msra.mxu0 0
    %442 = vmatprep.subr.bf16.mxu0 0
    %443 = vmatpush1.bf16.msra.mxu0 0
    %444 = vmatprep.subr.bf16.mxu0 0
    %445 = vmatpush1.bf16.msra.mxu0 0
    %446 = vmatprep.subr.bf16.mxu0 0
    %447 = vmatpush1.bf16.msra.mxu0 0
    %448 = vmatprep.subr.bf16.mxu0 0
    %449 = vmatpush1.bf16.msra.mxu0 0
    %450 = vmatprep.subr.bf16.mxu0 0
    %451 = vmatpush1.bf16.msra.mxu0 0
    %452 = vmatprep.subr.bf16.mxu0 0
    %453 = vmatpush1.bf16.msra.mxu0 0
    %454 = vmatprep.mubr.bf16.mxu0 0
    %455 = vmatmul.mubr.bf16.gmra.mrb[0].mxu0 %v335
    %v456 = vpop.f32.mrb[0].mxu0
    %v457 = vadd.f32 %v372, %v456
    %v458 = vpop.f32.mrb[0].mxu0
    %v459 = vpop.f32.mrb[0].mxu0
    %v460 = vadd.f32 %v372, %v459
    %v461 = vpop.f32.mrb[0].mxu0
    %462 = vmatprep.mubr.bf16.mxu0 0
    %463 = vmatmul.mubr.bf16.gmra.mrb[0].mxu0 %v336
    %v464 = vpop.f32.mrb[0].mxu0
    %v465 = vadd.f32 %v372, %v464
    %v466 = vpop.f32.mrb[0].mxu0
    %v467 = vpop.f32.mrb[0].mxu0
    %v468 = vadd.f32 %v372, %v467
    %v469 = vpop.f32.mrb[0].mxu0
    %470 = vmatprep.mubr.bf16.mxu0 0
    %471 = vmatmul.mubr.bf16.gmra.mrb[0].mxu0 %v337
    %v472 = vpop.f32.mrb[0].mxu0
    %v473 = vadd.f32 %v372, %v472
    %v474 = vpop.f32.mrb[0].mxu0
    %v475 = vpop.f32.mrb[0].mxu0
    %v476 = vadd.f32 %v372, %v475
    %v477 = vpop.f32.mrb[0].mxu0
    %478 = vmatprep.mubr.bf16.mxu0 0
    %479 = vmatmul.mubr.bf16.gmra.mrb[0].mxu0 %v338
    %v480 = vpop.f32.mrb[0].mxu0
    %v481 = vadd.f32 %v372, %v480
    %v482 = vpop.f32.mrb[0].mxu0
    %v483 = vpop.f32.mrb[0].mxu0
    %v484 = vadd.f32 %v372, %v483
    %v485 = vpop.f32.mrb[0].mxu0
    %486 = vmatprep.mubr.bf16.mxu0 0
    %487 = vmatmul.mubr.bf16.gmra.mrb[0].mxu0 %v339
    %v488 = vpop.f32.mrb[0].mxu0
    %v489 = vadd.f32 %v372, %v488
    %v490 = vpop.f32.mrb[0].mxu0
    %v491 = vpop.f32.mrb[0].mxu0
    %v492 = vadd.f32 %v372, %v491
    %v493 = vpop.f32.mrb[0].mxu0
    %494 = vmatprep.mubr.bf16.mxu0 0
    %495 = vmatmul.mubr.bf16.gmra.mrb[0].mxu0 %v340
    %v496 = vpop.f32.mrb[0].mxu0
    %v497 = vadd.f32 %v372, %v496
    %v498 = vpop.f32.mrb[0].mxu0
    %v499 = vpop.f32.mrb[0].mxu0
    %v500 = vadd.f32 %v372, %v499
    %v501 = vpop.f32.mrb[0].mxu0
    %502 = vmatprep.mubr.bf16.mxu0 0
    %503 = vmatmul.mubr.bf16.gmra.mrb[0].mxu0 %v341
    %v504 = vpop.f32.mrb[0].mxu0
    %v505 = vadd.f32 %v372, %v504
    %v506 = vpop.f32.mrb[0].mxu0
    %v507 = vpop.f32.mrb[0].mxu0
    %v508 = vadd.f32 %v372, %v507
    %v509 = vpop.f32.mrb[0].mxu0
    %510 = vmatprep.mubr.bf16.mxu0 0
    %511 = vmatmul.mubr.bf16.gmra.mrb[0].mxu0 %v342
    %v512 = vpop.f32.mrb[0].mxu0
    %v513 = vadd.f32 %v372, %v512
    %v514 = vpop.f32.mrb[0].mxu0
    %v515 = vpop.f32.mrb[0].mxu0
    %v516 = vadd.f32 %v372, %v515
    %v517 = vpop.f32.mrb[0].mxu0
    %518 = vmatprep.mubr.bf16.mxu0 0
    %519 = vmatmul.mubr.bf16.gmra.mrb[0].mxu0 %v343
    %v520 = vpop.f32.mrb[0].mxu0
    %v521 = vadd.f32 %v372, %v520
    %v522 = vpop.f32.mrb[0].mxu0
    %v523 = vpop.f32.mrb[0].mxu0
    %v524 = vadd.f32 %v372, %v523
    %v525 = vpop.f32.mrb[0].mxu0
    %526 = vmatprep.mubr.bf16.mxu0 0
    %527 = vmatmul.mubr.bf16.gmra.mrb[0].mxu0 %v344
    %v528 = vpop.f32.mrb[0].mxu0
    %v529 = vadd.f32 %v372, %v528
    %v530 = vpop.f32.mrb[0].mxu0
    %v531 = vpop.f32.mrb[0].mxu0
    %v532 = vadd.f32 %v372, %v531
    %v533 = vpop.f32.mrb[0].mxu0
    %534 = vmatprep.mubr.bf16.mxu0 0
    %535 = vmatmul.mubr.bf16.gmra.mrb[0].mxu0 %v345
    %v536 = vpop.f32.mrb[0].mxu0
    %v537 = vadd.f32 %v372, %v536
    %v538 = vpop.f32.mrb[0].mxu0
    %v539 = vpop.f32.mrb[0].mxu0
    %v540 = vadd.f32 %v372, %v539
    %v541 = vpop.f32.mrb[0].mxu0
    %542 = vmatprep.mubr.bf16.mxu0 0
    %543 = vmatmul.mubr.bf16.gmra.mrb[0].mxu0 %v346
    %v544 = vpop.f32.mrb[0].mxu0
    %v545 = vadd.f32 %v372, %v544
    %v546 = vpop.f32.mrb[0].mxu0
    %v547 = vpop.f32.mrb[0].mxu0
    %v548 = vadd.f32 %v372, %v547
    %v549 = vpop.f32.mrb[0].mxu0
    %550 = vmatprep.mubr.bf16.mxu0 0
    %551 = vmatmul.mubr.bf16.gmra.mrb[0].mxu0 %v347
    %v552 = vpop.f32.mrb[0].mxu0
    %v553 = vadd.f32 %v372, %v552
    %v554 = vpop.f32.mrb[0].mxu0
    %v555 = vpop.f32.mrb[0].mxu0
    %v556 = vadd.f32 %v372, %v555
    %v557 = vpop.f32.mrb[0].mxu0
    %558 = vmatprep.mubr.bf16.mxu0 0
    %559 = vmatmul.mubr.bf16.gmra.mrb[0].mxu0 %v348
    %v560 = vpop.f32.mrb[0].mxu0
    %v561 = vadd.f32 %v372, %v560
    %v562 = vpop.f32.mrb[0].mxu0
    %v563 = vpop.f32.mrb[0].mxu0
    %v564 = vadd.f32 %v372, %v563
    %v565 = vpop.f32.mrb[0].mxu0
    %566 = vmatprep.mubr.bf16.mxu0 0
    %567 = vmatmul.mubr.bf16.gmra.mrb[0].mxu0 %v349
    %v568 = vpop.f32.mrb[0].mxu0
    %v569 = vadd.f32 %v372, %v568
    %v570 = vpop.f32.mrb[0].mxu0
    %v571 = vpop.f32.mrb[0].mxu0
    %v572 = vadd.f32 %v372, %v571
    %v573 = vpop.f32.mrb[0].mxu0
    %574 = vmatprep.mubr.bf16.mxu0 0
    %575 = vmatmul.mubr.bf16.gmra.mrb[0].mxu0 %v350
    %v576 = vpop.f32.mrb[0].mxu0
    %v577 = vadd.f32 %v372, %v576
    %v578 = vpop.f32.mrb[0].mxu0
    %v579 = vpop.f32.mrb[0].mxu0
    %v580 = vadd.f32 %v372, %v579
    %v581 = vpop.f32.mrb[0].mxu0
    %582 = vdwg.mxu0
    %583 = vmax.xlane.f32.xlu0 %v457
    %v584 = vpop.xlane.xlu0 %583
    %585 = vmax.xlane.f32.xlu0 %v460
    %v586 = vpop.xlane.xlu0 %585
    %587 = vmax.xlane.f32.xlu0 %v465
    %v588 = vpop.xlane.xlu0 %587
    %589 = vmax.xlane.f32.xlu0 %v468
    %v590 = vpop.xlane.xlu0 %589
    %591 = vmax.xlane.f32.xlu0 %v473
    %v592 = vpop.xlane.xlu0 %591
    %593 = vmax.xlane.f32.xlu0 %v476
    %v594 = vpop.xlane.xlu0 %593
    %595 = vmax.xlane.f32.xlu0 %v481
    %v596 = vpop.xlane.xlu0 %595
    %597 = vmax.xlane.f32.xlu0 %v484
    %v598 = vpop.xlane.xlu0 %597
    %599 = vmax.xlane.f32.xlu0 %v489
    %v600 = vpop.xlane.xlu0 %599
    %601 = vmax.xlane.f32.xlu0 %v492
    %v602 = vpop.xlane.xlu0 %601
    %603 = vmax.xlane.f32.xlu0 %v497
    %v604 = vpop.xlane.xlu0 %603
    %605 = vmax.xlane.f32.xlu0 %v500
    %v606 = vpop.xlane.xlu0 %605
    %607 = vmax.xlane.f32.xlu0 %v505
    %v608 = vpop.xlane.xlu0 %607
    %609 = vmax.xlane.f32.xlu0 %v508
    %v610 = vpop.xlane.xlu0 %609
    %611 = vmax.xlane.f32.xlu0 %v513
    %v612 = vpop.xlane.xlu0 %611
    %613 = vmax.xlane.f32.xlu0 %v516
    %v614 = vpop.xlane.xlu0 %613
    %615 = vmax.xlane.f32.xlu0 %v521
    %v616 = vpop.xlane.xlu0 %615
    %617 = vmax.xlane.f32.xlu0 %v524
    %v618 = vpop.xlane.xlu0 %617
    %619 = vmax.xlane.f32.xlu0 %v529
    %v620 = vpop.xlane.xlu0 %619
    %621 = vmax.xlane.f32.xlu0 %v532
    %v622 = vpop.xlane.xlu0 %621
    %623 = vmax.xlane.f32.xlu0 %v537
    %v624 = vpop.xlane.xlu0 %623
    %625 = vmax.xlane.f32.xlu0 %v540
    %v626 = vpop.xlane.xlu0 %625
    %627 = vmax.xlane.f32.xlu0 %v545
    %v628 = vpop.xlane.xlu0 %627
    %629 = vmax.xlane.f32.xlu0 %v548
    %v630 = vpop.xlane.xlu0 %629
    %631 = vmax.xlane.f32.xlu0 %v553
    %v632 = vpop.xlane.xlu0 %631
    %633 = vmax.xlane.f32.xlu0 %v556
    %v634 = vpop.xlane.xlu0 %633
    %635 = vmax.xlane.f32.xlu0 %v561
    %v636 = vpop.xlane.xlu0 %635
    %637 = vmax.xlane.f32.xlu0 %v564
    %v638 = vpop.xlane.xlu0 %637
    %639 = vmax.xlane.f32.xlu0 %v569
    %v640 = vpop.xlane.xlu0 %639
    %641 = vmax.xlane.f32.xlu0 %v572
    %v642 = vpop.xlane.xlu0 %641
    %643 = vmax.xlane.f32.xlu0 %v577
    %v644 = vpop.xlane.xlu0 %643
    %645 = vmax.xlane.f32.xlu0 %v580
    %v646 = vpop.xlane.xlu0 %645
    %v647 = vsub.f32 %v457, %v584
    %v648 = vsub.f32 %v460, %v586
    %v649 = vsub.f32 %v465, %v588
    %v650 = vsub.f32 %v468, %v590
    %v651 = vsub.f32 %v473, %v592
    %v652 = vsub.f32 %v476, %v594
    %v653 = vsub.f32 %v481, %v596
    %v654 = vsub.f32 %v484, %v598
    %v655 = vsub.f32 %v489, %v600
    %v656 = vsub.f32 %v492, %v602
    %v657 = vsub.f32 %v497, %v604
    %v658 = vsub.f32 %v500, %v606
    %v659 = vsub.f32 %v505, %v608
    %v660 = vsub.f32 %v508, %v610
    %v661 = vsub.f32 %v513, %v612
    %v662 = vsub.f32 %v516, %v614
    %v663 = vsub.f32 %v521, %v616
    %v664 = vsub.f32 %v524, %v618
    %v665 = vsub.f32 %v529, %v620
    %v666 = vsub.f32 %v532, %v622
    %v667 = vsub.f32 %v537, %v624
    %v668 = vsub.f32 %v540, %v626
    %v669 = vsub.f32 %v545, %v628
    %v670 = vsub.f32 %v548, %v630
    %v671 = vsub.f32 %v553, %v632
    %v672 = vsub.f32 %v556, %v634
    %v673 = vsub.f32 %v561, %v636
    %v674 = vsub.f32 %v564, %v638
    %v675 = vsub.f32 %v569, %v640
    %v676 = vsub.f32 %v572, %v642
    %v677 = vsub.f32 %v577, %v644
    %v678 = vsub.f32 %v580, %v646
    %v679 = vmul.f32 %v647, 1.442695
    %v680 = vpow.pop %v679
    %v681 = vmul.f32 %v648, 1.442695
    %v682 = vpow.pop %v681
    %v683 = vmul.f32 %v649, 1.442695
    %v684 = vpow.pop %v683
    %v685 = vmul.f32 %v650, 1.442695
    %v686 = vpow.pop %v685
    %v687 = vmul.f32 %v651, 1.442695
    %v688 = vpow.pop %v687
    %v689 = vmul.f32 %v652, 1.442695
    %v690 = vpow.pop %v689
    %v691 = vmul.f32 %v653, 1.442695
    %v692 = vpow.pop %v691
    %v693 = vmul.f32 %v654, 1.442695
    %v694 = vpow.pop %v693
    %v695 = vmul.f32 %v655, 1.442695
    %v696 = vpow.pop %v695
    %v697 = vmul.f32 %v656, 1.442695
    %v698 = vpow.pop %v697
    %v699 = vmul.f32 %v657, 1.442695
    %v700 = vpow.pop %v699
    %v701 = vmul.f32 %v658, 1.442695
    %v702 = vpow.pop %v701
    %v703 = vmul.f32 %v659, 1.442695
    %v704 = vpow.pop %v703
    %v705 = vmul.f32 %v660, 1.442695
    %v706 = vpow.pop %v705
    %v707 = vmul.f32 %v661, 1.442695
    %v708 = vpow.pop %v707
    %v709 = vmul.f32 %v662, 1.442695
    %v710 = vpow.pop %v709
    %v711 = vmul.f32 %v663, 1.442695
    %v712 = vpow.pop %v711
    %v713 = vmul.f32 %v664, 1.442695
    %v714 = vpow.pop %v713
    %v715 = vmul.f32 %v665, 1.442695
    %v716 = vpow.pop %v715
    %v717 = vmul.f32 %v666, 1.442695
    %v718 = vpow.pop %v717
    %v719 = vmul.f32 %v667, 1.442695
    %v720 = vpow.pop %v719
    %v721 = vmul.f32 %v668, 1.442695
    %v722 = vpow.pop %v721
    %v723 = vmul.f32 %v669, 1.442695
    %v724 = vpow.pop %v723
    %v725 = vmul.f32 %v670, 1.442695
    %v726 = vpow.pop %v725
    %v727 = vmul.f32 %v671, 1.442695
    %v728 = vpow.pop %v727
    %v729 = vmul.f32 %v672, 1.442695
    %v730 = vpow.pop %v729
    %v731 = vmul.f32 %v673, 1.442695
    %v732 = vpow.pop %v731
    %v733 = vmul.f32 %v674, 1.442695
    %v734 = vpow.pop %v733
    %v735 = vmul.f32 %v675, 1.442695
    %v736 = vpow.pop %v735
    %v737 = vmul.f32 %v676, 1.442695
    %v738 = vpow.pop %v737
    %v739 = vmul.f32 %v677, 1.442695
    %v740 = vpow.pop %v739
    %v741 = vmul.f32 %v678, 1.442695
    %v742 = vpow.pop %v741
    %743 = vadd.xlane.f32.xlu0 %v680
    %v744 = vpop.xlane.xlu0 %743
    %745 = vadd.xlane.f32.xlu0 %v682
    %v746 = vpop.xlane.xlu0 %745
    %747 = vadd.xlane.f32.xlu0 %v684
    %v748 = vpop.xlane.xlu0 %747
    %749 = vadd.xlane.f32.xlu0 %v686
    %v750 = vpop.xlane.xlu0 %749
    %751 = vadd.xlane.f32.xlu0 %v688
    %v752 = vpop.xlane.xlu0 %751
    %753 = vadd.xlane.f32.xlu0 %v690
    %v754 = vpop.xlane.xlu0 %753
    %755 = vadd.xlane.f32.xlu0 %v692
    %v756 = vpop.xlane.xlu0 %755
    %757 = vadd.xlane.f32.xlu0 %v694
    %v758 = vpop.xlane.xlu0 %757
    %759 = vadd.xlane.f32.xlu0 %v696
    %v760 = vpop.xlane.xlu0 %759
    %761 = vadd.xlane.f32.xlu0 %v698
    %v762 = vpop.xlane.xlu0 %761
    %763 = vadd.xlane.f32.xlu0 %v700
    %v764 = vpop.xlane.xlu0 %763
    %765 = vadd.xlane.f32.xlu0 %v702
    %v766 = vpop.xlane.xlu0 %765
    %767 = vadd.xlane.f32.xlu0 %v704
    %v768 = vpop.xlane.xlu0 %767
    %769 = vadd.xlane.f32.xlu0 %v706
    %v770 = vpop.xlane.xlu0 %769
    %771 = vadd.xlane.f32.xlu0 %v708
    %v772 = vpop.xlane.xlu0 %771
    %773 = vadd.xlane.f32.xlu0 %v710
    %v774 = vpop.xlane.xlu0 %773
    %775 = vadd.xlane.f32.xlu0 %v712
    %v776 = vpop.xlane.xlu0 %775
    %777 = vadd.xlane.f32.xlu0 %v714
    %v778 = vpop.xlane.xlu0 %777
    %779 = vadd.xlane.f32.xlu0 %v716
    %v780 = vpop.xlane.xlu0 %779
    %781 = vadd.xlane.f32.xlu0 %v718
    %v782 = vpop.xlane.xlu0 %781
    %783 = vadd.xlane.f32.xlu0 %v720
    %v784 = vpop.xlane.xlu0 %783
    %785 = vadd.xlane.f32.xlu0 %v722
    %v786 = vpop.xlane.xlu0 %785
    %787 = vadd.xlane.f32.xlu0 %v724
    %v788 = vpop.xlane.xlu0 %787
    %789 = vadd.xlane.f32.xlu0 %v726
    %v790 = vpop.xlane.xlu0 %789
    %791 = vadd.xlane.f32.xlu0 %v728
    %v792 = vpop.xlane.xlu0 %791
    %793 = vadd.xlane.f32.xlu0 %v730
    %v794 = vpop.xlane.xlu0 %793
    %795 = vadd.xlane.f32.xlu0 %v732
    %v796 = vpop.xlane.xlu0 %795
    %797 = vadd.xlane.f32.xlu0 %v734
    %v798 = vpop.xlane.xlu0 %797
    %799 = vadd.xlane.f32.xlu0 %v736
    %v800 = vpop.xlane.xlu0 %799
    %801 = vadd.xlane.f32.xlu0 %v738
    %v802 = vpop.xlane.xlu0 %801
    %803 = vadd.xlane.f32.xlu0 %v740
    %v804 = vpop.xlane.xlu0 %803
    %805 = vadd.xlane.f32.xlu0 %v742
    %v806 = vpop.xlane.xlu0 %805
    %v807 = vlog2.pop %v744
    %v808 = vmul.f32 %v807, 0.6931472
    %v809 = vlog2.pop %v746
    %v810 = vmul.f32 %v809, 0.6931472
    %v811 = vlog2.pop %v748
    %v812 = vmul.f32 %v811, 0.6931472
    %v813 = vlog2.pop %v750
    %v814 = vmul.f32 %v813, 0.6931472
    %v815 = vlog2.pop %v752
    %v816 = vmul.f32 %v815, 0.6931472
    %v817 = vlog2.pop %v754
    %v818 = vmul.f32 %v817, 0.6931472
    %v819 = vlog2.pop %v756
    %v820 = vmul.f32 %v819, 0.6931472
    %v821 = vlog2.pop %v758
    %v822 = vmul.f32 %v821, 0.6931472
    %v823 = vlog2.pop %v760
    %v824 = vmul.f32 %v823, 0.6931472
    %v825 = vlog2.pop %v762
    %v826 = vmul.f32 %v825, 0.6931472
    %v827 = vlog2.pop %v764
    %v828 = vmul.f32 %v827, 0.6931472
    %v829 = vlog2.pop %v766
    %v830 = vmul.f32 %v829, 0.6931472
    %v831 = vlog2.pop %v768
    %v832 = vmul.f32 %v831, 0.6931472
    %v833 = vlog2.pop %v770
    %v834 = vmul.f32 %v833, 0.6931472
    %v835 = vlog2.pop %v772
    %v836 = vmul.f32 %v835, 0.6931472
    %v837 = vlog2.pop %v774
    %v838 = vmul.f32 %v837, 0.6931472
    %v839 = vlog2.pop %v776
    %v840 = vmul.f32 %v839, 0.6931472
    %v841 = vlog2.pop %v778
    %v842 = vmul.f32 %v841, 0.6931472
    %v843 = vlog2.pop %v780
    %v844 = vmul.f32 %v843, 0.6931472
    %v845 = vlog2.pop %v782
    %v846 = vmul.f32 %v845, 0.6931472
    %v847 = vlog2.pop %v784
    %v848 = vmul.f32 %v847, 0.6931472
    %v849 = vlog2.pop %v786
    %v850 = vmul.f32 %v849, 0.6931472
    %v851 = vlog2.pop %v788
    %v852 = vmul.f32 %v851, 0.6931472
    %v853 = vlog2.pop %v790
    %v854 = vmul.f32 %v853, 0.6931472
    %v855 = vlog2.pop %v792
    %v856 = vmul.f32 %v855, 0.6931472
    %v857 = vlog2.pop %v794
    %v858 = vmul.f32 %v857, 0.6931472
    %v859 = vlog2.pop %v796
    %v860 = vmul.f32 %v859, 0.6931472
    %v861 = vlog2.pop %v798
    %v862 = vmul.f32 %v861, 0.6931472
    %v863 = vlog2.pop %v800
    %v864 = vmul.f32 %v863, 0.6931472
    %v865 = vlog2.pop %v802
    %v866 = vmul.f32 %v865, 0.6931472
    %v867 = vlog2.pop %v804
    %v868 = vmul.f32 %v867, 0.6931472
    %v869 = vlog2.pop %v806
    %v870 = vmul.f32 %v869, 0.6931472
    %v871 = vsub.f32 %v647, %v808
    %v872 = vsub.f32 %v648, %v810
    %v873 = vsub.f32 %v649, %v812
    %v874 = vsub.f32 %v650, %v814
    %v875 = vsub.f32 %v651, %v816
    %v876 = vsub.f32 %v652, %v818
    %v877 = vsub.f32 %v653, %v820
    %v878 = vsub.f32 %v654, %v822
    %v879 = vsub.f32 %v655, %v824
    %v880 = vsub.f32 %v656, %v826
    %v881 = vsub.f32 %v657, %v828
    %v882 = vsub.f32 %v658, %v830
    %v883 = vsub.f32 %v659, %v832
    %v884 = vsub.f32 %v660, %v834
    %v885 = vsub.f32 %v661, %v836
    %v886 = vsub.f32 %v662, %v838
    %v887 = vsub.f32 %v663, %v840
    %v888 = vsub.f32 %v664, %v842
    %v889 = vsub.f32 %v665, %v844
    %v890 = vsub.f32 %v666, %v846
    %v891 = vsub.f32 %v667, %v848
    %v892 = vsub.f32 %v668, %v850
    %v893 = vsub.f32 %v669, %v852
    %v894 = vsub.f32 %v670, %v854
    %v895 = vsub.f32 %v671, %v856
    %v896 = vsub.f32 %v672, %v858
    %v897 = vsub.f32 %v673, %v860
    %v898 = vsub.f32 %v674, %v862
    %v899 = vsub.f32 %v675, %v864
    %v900 = vsub.f32 %v676, %v866
    %v901 = vsub.f32 %v677, %v868
    %v902 = vsub.f32 %v678, %v870
    %903 = vst [vmem:[#allocation2] sm:$0xff] %v871
    %904 = vst [vmem:[#allocation2 + $0x8] sm:$0xff] %v872
    %905 = vst [vmem:[#allocation2 + $0x10] sm:$0xff] %v873
    %906 = vst [vmem:[#allocation2 + $0x18] sm:$0xff] %v874
    %907 = vst [vmem:[#allocation2 + $0x20] sm:$0xff] %v875
    %908 = vst [vmem:[#allocation2 + $0x28] sm:$0xff] %v876
    %909 = vst [vmem:[#allocation2 + $0x30] sm:$0xff] %v877
    %910 = vst [vmem:[#allocation2 + $0x38] sm:$0xff] %v878
    %911 = vst [vmem:[#allocation2 + $0x40] sm:$0xff] %v879
    %912 = vst [vmem:[#allocation2 + $0x48] sm:$0xff] %v880
    %913 = vst [vmem:[#allocation2 + $0x50] sm:$0xff] %v881
    %914 = vst [vmem:[#allocation2 + $0x58] sm:$0xff] %v882
    %915 = vst [vmem:[#allocation2 + $0x60] sm:$0xff] %v883
    %916 = vst [vmem:[#allocation2 + $0x68] sm:$0xff] %v884
    %917 = vst [vmem:[#allocation2 + $0x70] sm:$0xff] %v885
    %918 = vst [vmem:[#allocation2 + $0x78] sm:$0xff] %v886
    %919 = vst [vmem:[#allocation2 + $0x80] sm:$0xff] %v887
    %920 = vst [vmem:[#allocation2 + $0x88] sm:$0xff] %v888
    %921 = vst [vmem:[#allocation2 + $0x90] sm:$0xff] %v889
    %922 = vst [vmem:[#allocation2 + $0x98] sm:$0xff] %v890
    %923 = vst [vmem:[#allocation2 + $0xa0] sm:$0xff] %v891
    %924 = vst [vmem:[#allocation2 + $0xa8] sm:$0xff] %v892
    %925 = vst [vmem:[#allocation2 + $0xb0] sm:$0xff] %v893
    %926 = vst [vmem:[#allocation2 + $0xb8] sm:$0xff] %v894
    %927 = vst [vmem:[#allocation2 + $0xc0] sm:$0xff] %v895
    %928 = vst [vmem:[#allocation2 + $0xc8] sm:$0xff] %v896
    %929 = vst [vmem:[#allocation2 + $0xd0] sm:$0xff] %v897
    %930 = vst [vmem:[#allocation2 + $0xd8] sm:$0xff] %v898
    %931 = vst [vmem:[#allocation2 + $0xe0] sm:$0xff] %v899
    %932 = vst [vmem:[#allocation2 + $0xe8] sm:$0xff] %v900
    %933 = vst [vmem:[#allocation2 + $0xf0] sm:$0xff] %v901
    %934 = vst [vmem:[#allocation2 + $0xf8] sm:$0xff] %v902
    // Predicated region
    $region22: #{_dense_net_call.1} parent=1 // pred_check
      _
    $region23: #{_dense_net_call.1} parent=1 // pred_check_branch
      %936 = sbr.rel (0) target = $region25
    $region24: #{_dense_net_call.1} parent=1 // pred_region
      %s938 = ssub.s32 4096, 4096
      %939 = vsyncadd [#allocation3], %s938
      %s940 = sshll.u32 [#allocation2], 4
      %s941 = int_to_ptr.vmem [resolvable:$true] %s940
      %946 = dma.vmem_to_hbm [thread:$0]  %s941, 4096, %s5, [#allocation3], 128, 128, 8
    $region25: #{_dense_net_call.1} parent=1 // pred_fallthru
      _
    // Predicated region
    $region26: #{_dense_net_call.1} parent=1 // pred_check
      _
    $region27: #{_dense_net_call.1} parent=1 // pred_check_branch
      %948 = sbr.rel (0) target = $region29
    $region28: #{_dense_net_call.1} parent=1 // pred_region
      %949 = dma.done [#allocation3], 4096
    $region29: #{_dense_net_call.1} parent=1 // pred_fallthru
      _
    %950 = vsyncpa [#allocation3], 1

</llo_original>
